<compile_context>
chip_gen: v7x
topology: tpu7x:2x2x1
jax: 0.10.0
libtpu: 0.0.40
codegen_flags: <defaults>
</compile_context>

<pallas_src>
import jax
import jax.numpy as jnp
from jax.experimental import pallas as pl
from jax.experimental.pallas import tpu as pltpu


def _round_up(x, m):
    return (x + m - 1) // m * m


# ---------------------------------------------------------------------------
# Kernels
# ---------------------------------------------------------------------------

def _mlp_kernel(x_ref, w_ref, b_ref, o_ref):
    """out = ReLU(x @ w + b); full K in one MXU pass, f32 accumulation."""
    x = x_ref[...].astype(w_ref.dtype)                      # in-VMEM cast feeding the MXU
    acc = jnp.dot(x, w_ref[...], preferred_element_type=jnp.float32)
    o_ref[...] = jnp.maximum(acc + b_ref[...], 0.0).astype(o_ref.dtype)


def _mlp_kernel_splitk(x_ref, w_ref, b_ref, o_ref, acc_ref):
    """Split-K variant: grid = (cols, rows, k), k innermost ('arbitrary')."""
    k = pl.program_id(2)

    @pl.when(k == 0)
    def _():
        acc_ref[...] = jnp.zeros_like(acc_ref)

    x = x_ref[...].astype(w_ref.dtype)
    acc_ref[...] += jnp.dot(x, w_ref[...], preferred_element_type=jnp.float32)

    @pl.when(k == pl.num_programs(2) - 1)
    def _():
        o_ref[...] = jnp.maximum(acc_ref[...] + b_ref[...], 0.0).astype(o_ref.dtype)


# ---------------------------------------------------------------------------
# VMEM budgeting
# ---------------------------------------------------------------------------

_HEADROOM = 8 << 20           # compiler-internal scratch headroom
_MIN_VMEM_LIMIT = 32 << 20


def _vmem_budget_bytes():
    """~75% of this generation's physical VMEM (v5e/v6e: 128 MiB, v7x: 64 MiB)."""
    try:
        cap = pltpu.get_tpu_info().vmem_capacity_bytes
    except Exception:
        cap = 64 << 20        # conservative (v7x-sized) fallback
    return (cap * 3) // 4


def _tile_bytes(tm, tk, tn, x_bytes, w_bytes, out_bytes, with_acc=False):
    total = (2 * tm * tk * x_bytes        # double-buffered X tile
             + 2 * tk * tn * w_bytes      # double-buffered W tile / stripe
             + 2 * tn * 4                 # bias stripe (f32)
             + 2 * tm * tn * out_bytes)   # double-buffered output tile
    if with_acc:
        total += tm * tn * 4              # f32 accumulator scratch (split-K only)
    return total


# ---------------------------------------------------------------------------
# Parameter prep (one-time, at load) + forward
# ---------------------------------------------------------------------------

def prepare_params(weight, bias, *, compute_dtype=jnp.bfloat16):
    """weight: (D_out, D_in) nn.Linear layout; bias: (D_out,).

    Returns (w (D_in, D_out_pad) in compute_dtype, b (1, D_out_pad) f32, d_out).
    D_out is padded to a multiple of 128 for lane-dense (unmasked) stores; padded
    columns are zero and sliced off in mlp_forward. Use compute_dtype=jnp.float32
    for accuracy-sensitive layers.
    """
    d_out, d_in = weight.shape
    d_out_pad = _round_up(d_out, 128)
    w = jnp.zeros((d_in, d_out_pad), compute_dtype)
    w = w.at[:, :d_out].set(weight.T.astype(compute_dtype))
    b = jnp.zeros((1, d_out_pad), jnp.float32)
    b = b.at[0, :d_out].set(bias.astype(jnp.float32))
    return w, b, d_out


def mlp_forward(x, w_prepared, b_prepared, d_out, *, out_dtype=None):
    """x: (B, S, D_in) -> ReLU(x @ W.T + b): (B, S, D_out).

    Pass bf16 x / out_dtype=jnp.bfloat16 when adjacent layers allow, to halve
    activation HBM traffic; accumulation stays f32 either way.
    """
    B, S, d_in = x.shape
    d_in_w, d_out_pad = w_prepared.shape
    assert d_in == d_in_w, "feature dim mismatch"
    out_dtype = x.dtype if out_dtype is None else jnp.dtype(out_dtype)

    M = B * S
    x2d = x.reshape(M, d_in)          # metadata-only reshape; no jnp.pad HBM round-trip

    budget = _vmem_budget_bytes()
    x_bytes = x2d.dtype.itemsize
    w_bytes = jnp.dtype(w_prepared.dtype).itemsize
    o_bytes = jnp.dtype(out_dtype).itemsize

    # Row-tile candidates. Ragged last row block is handled by Pallas masking
    # (rows are independent; masked garbage rows never reach HBM).
    if M < 128:
        tm_candidates = [M]           # single block == full dim (allowed even if not 8-aligned)
    else:
        cands = (1024, 512, 256, 128) if d_in <= 1024 else (512, 256, 128)
        tm_candidates = [t for t in cands if t <= M] or [128]

    tn_stripe = next(t for t in (512, 256, 128) if d_out_pad % t == 0)

    def fits(tm, tk, tn, with_acc=False):
        return _tile_bytes(tm, tk, tn, x_bytes, w_bytes, o_bytes, with_acc) + _HEADROOM <= budget

    plan = None
    # Path 1: W + bias fully VMEM-resident, 1-D row grid -> W is DMA'd from HBM once.
    for tm in tm_candidates:
        if fits(tm, d_in, d_out_pad):
            plan = ("resident", tm, d_out_pad, d_in)
            break
    # Path 2: column-striped W, grid=(cols, rows): each W stripe loaded once, rows stream under it.
    if plan is None:
        for tm in tm_candidates:
            if fits(tm, d_in, tn_stripe):
                plan = ("striped", tm, tn_stripe, d_in)
                break
    # Path 3: split-K with an f32 accumulator for very wide d_in.
    if plan is None:
        tk = next((t for t in (4096, 2048, 1024, 512, 256, 128) if d_in % t == 0), None)
        if tk is not None:
            for tm in tm_candidates:
                if fits(tm, tk, tn_stripe, with_acc=True):
                    plan = ("splitk", tm, tn_stripe, tk)
                    break
    if plan is None:
        # TODO(synk): ragged split-K for d_in not a multiple of 128; fall back to the smallest
        # striped tiling and let the compiler manage VMEM.
        plan = ("striped", tm_candidates[-1], tn_stripe, d_in)

    kind, tm, tn, tk = plan

    if kind == "resident":
        grid = (pl.cdiv(M, tm),)
        in_specs = [
            pl.BlockSpec((tm, d_in), lambda i: (i, 0)),             # row tile of X
            pl.BlockSpec((d_in, d_out_pad), lambda i: (0, 0)),      # full W, resident
            pl.BlockSpec((1, d_out_pad), lambda i: (0, 0)),         # full bias, resident
        ]
        out_specs = pl.BlockSpec((tm, d_out_pad), lambda i: (i, 0))
        scratch_shapes = []
        dims = ("parallel",)
        kernel = _mlp_kernel
        with_acc = False
    elif kind == "striped":
        grid = (d_out_pad // tn, pl.cdiv(M, tm))                    # cols outer, rows inner
        in_specs = [
            pl.BlockSpec((tm, d_in), lambda j, i: (i, 0)),          # row tile of X (streams)
            pl.BlockSpec((d_in, tn), lambda j, i: (0, j)),          # W stripe (resident per j)
            pl.BlockSpec((1, tn), lambda j, i: (0, j)),             # bias stripe
        ]
        out_specs = pl.BlockSpec((tm, tn), lambda j, i: (i, j))
        scratch_shapes = []
        dims = ("parallel", "parallel")
        kernel = _mlp_kernel
        with_acc = False
    else:  # splitk
        grid = (d_out_pad // tn, pl.cdiv(M, tm), d_in // tk)
        in_specs = [
            pl.BlockSpec((tm, tk), lambda j, i, k: (i, k)),
            pl.BlockSpec((tk, tn), lambda j, i, k: (k, j)),
            pl.BlockSpec((1, tn), lambda j, i, k: (0, j)),
        ]
        out_specs = pl.BlockSpec((tm, tn), lambda j, i, k: (i, j))
        scratch_shapes = [pltpu.VMEM((tm, tn), jnp.float32)]
        dims = ("parallel", "parallel", "arbitrary")
        kernel = _mlp_kernel_splitk
        with_acc = True

    footprint = _tile_bytes(tm, tk, tn, x_bytes, w_bytes, o_bytes, with_acc)
    vmem_limit = int(min(max(footprint + _HEADROOM, _MIN_VMEM_LIMIT), budget))

    out2d = pl.pallas_call(
        kernel,
        out_shape=jax.ShapeDtypeStruct((M, d_out_pad), out_dtype),
        grid_spec=pltpu.PrefetchScalarGridSpec(
            num_scalar_prefetch=0,
            grid=grid,
            in_specs=in_specs,
            out_specs=out_specs,
            scratch_shapes=scratch_shapes,
        ),
        compiler_params=pltpu.CompilerParams(
            dimension_semantics=dims,
            vmem_limit_bytes=vmem_limit,
        ),
    )(x2d, w_prepared, b_prepared)

    return out2d[:, :d_out].reshape(B, S, d_out)


def mlp_reference(x, weight, bias):
    return jnp.maximum(jnp.einsum("bsd,od->bso", x, weight) + bias, 0.0)


if __name__ == "__main__":
    key = jax.random.PRNGKey(0)
    k_x, k_w, k_b = jax.random.split(key, 3)

    B, S, D_in, D_out = 2, 8, 32, 64

    # Deterministic parameter init (Kaiming-uniform-ish, like nn.Linear defaults).
    bound = 1.0 / jnp.sqrt(D_in)
    weight = jax.random.uniform(k_w, (D_out, D_in), jnp.float32, -bound, bound)
    bias = jax.random.uniform(k_b, (D_out,), jnp.float32, -bound, bound)
    x = jax.random.normal(k_x, (B, S, D_in), jnp.float32)

    # One-time parameter prep (transpose + lane-pad to 128 + bf16 cast).
    w_prep, b_prep, d_out = prepare_params(weight, bias, compute_dtype=jnp.bfloat16)

    out = mlp_forward(x, w_prep, b_prep, d_out)
    jax.block_until_ready(out)

    ref = mlp_reference(x, weight, bias)
    assert out.shape == (B, S, D_out)
    # bf16 MXU operands with f32 accumulation -> relaxed tolerance vs the f32 reference.
    assert jnp.allclose(out, ref, atol=5e-2, rtol=5e-2), float(jnp.max(jnp.abs(out - ref)))

    print("KERNEL_OK")
</pallas_src>

<mosaic_0001>
module attributes {stable_mosaic.version = 11 : i64} {
  func.func @_mlp_kernel(%arg0: i32, %arg1: memref<16x32xf32, #tpu.memory_space<vmem>>, %arg2: memref<32x128xbf16, #tpu.memory_space<vmem>>, %arg3: memref<1x128xf32, #tpu.memory_space<vmem>>, %arg4: memref<16x128xf32, #tpu.memory_space<vmem>>) attributes {dimension_semantics = [#tpu.dimension_semantics<parallel>], iteration_bounds = array<i64: 1>, scalar_prefetch = 0 : i64, scratch_operands = 0 : i64, tpu.core_type = #tpu.core_type<tc>, window_params = [{transform_indices = @transform_0, window_bounds = array<i64: 16, 32>}, {pipeline_mode = #tpu.pipeline_mode<synchronous>, transform_indices = @transform_1, window_bounds = array<i64: 32, 128>}, {pipeline_mode = #tpu.pipeline_mode<synchronous>, transform_indices = @transform_2, window_bounds = array<i64: 1, 128>}, {transform_indices = @transform_3, window_bounds = array<i64: 16, 128>}]} {
    %c0 = arith.constant 0 : index
    %c0_0 = arith.constant 0 : index
    %0 = vector.load %arg1[%c0, %c0_0] : memref<16x32xf32, #tpu.memory_space<vmem>>, vector<16x32xf32>
    %1 = arith.truncf %0 : vector<16x32xf32> to vector<16x32xbf16>
    %c0_1 = arith.constant 0 : index
    %c0_2 = arith.constant 0 : index
    %2 = vector.load %arg2[%c0_1, %c0_2] : memref<32x128xbf16, #tpu.memory_space<vmem>>, vector<32x128xbf16>
    %cst = arith.constant dense<0.000000e+00> : vector<16x128xf32>
    %3 = tpu.matmul %1, %2, %cst {dimension_numbers = #tpu.dot_dimension_numbers<[1], [0], [0], [1], [0, 0, 1, 1], [], []>} : vector<16x32xbf16>, vector<32x128xbf16>, vector<16x128xf32> -> vector<16x128xf32>
    %c0_3 = arith.constant 0 : index
    %c0_4 = arith.constant 0 : index
    %4 = vector.load %arg3[%c0_3, %c0_4] : memref<1x128xf32, #tpu.memory_space<vmem>>, vector<1x128xf32>
    %5 = vector.broadcast %4 : vector<1x128xf32> to vector<16x128xf32>
    %6 = arith.addf %3, %5 : vector<16x128xf32>
    %cst_5 = arith.constant 0.000000e+00 : f32
    %7 = vector.broadcast %cst_5 : f32 to vector<16x128xf32>
    %8 = arith.maximumf %6, %7 : vector<16x128xf32>
    %c0_6 = arith.constant 0 : index
    %c0_7 = arith.constant 0 : index
    %9 = vector.load %arg4[%c0_6, %c0_7] : memref<16x128xf32, #tpu.memory_space<vmem>>, vector<16x128xf32>
    tpu.vector_store %arg4[%c0_6, %c0_7], %8 {strides = array<i32>} : memref<16x128xf32, #tpu.memory_space<vmem>>, vector<16x128xf32>,
    return
  }
  func.func @transform_0(%arg0: i32) -> (i32, i32) {
    %c0_i32 = arith.constant 0 : i32
    %c0_i32_0 = arith.constant 0 : i32
    return %arg0, %c0_i32 : i32, i32
  }
  func.func @transform_1(%arg0: i32) -> (i32, i32) {
    %c0_i32 = arith.constant 0 : i32
    %c0_i32_0 = arith.constant 0 : i32
    %c0_i32_1 = arith.constant 0 : i32
    return %c0_i32, %c0_i32_0 : i32, i32
  }
  func.func @transform_2(%arg0: i32) -> (i32, i32) {
    %c0_i32 = arith.constant 0 : i32
    %c0_i32_0 = arith.constant 0 : i32
    %c0_i32_1 = arith.constant 0 : i32
    return %c0_i32, %c0_i32_0 : i32, i32
  }
  func.func @transform_3(%arg0: i32) -> (i32, i32) {
    %c0_i32 = arith.constant 0 : i32
    %c0_i32_0 = arith.constant 0 : i32
    return %arg0, %c0_i32 : i32, i32
  }
}

</mosaic_0001>

<llo_original>
// kernel: tpu_custom_call.1
$region0: #{tpu_custom_call.1}
  #allocation0 [shape = 'u32[]', space=smem, size = 0x4, offset = 0x4, fixed_abs, tag = 'smem constant byte address 0x4 - core index']
  #allocation1 [shape = 'u32[144,128]{1,0:T(1,128)}', space=vmem, size = 0x12000, scoped, tag = 'internal scratch']
  %s0 = inlined_call_operand.hbm [shape: f32[16,32], index: 0, kind: input, shape index: {}]
  %s1 = inlined_call_operand.hbm [shape: bf16[32,128], index: 1, kind: input, shape index: {}]
  %s2 = inlined_call_operand.vmem [shape: f32[1,128], index: 2, kind: input, shape index: {}]
  %s3 = inlined_call_operand.hbm [shape: f32[16,128], index: 3, kind: output, shape index: {}]
  %s4 = sld [smem:[#allocation0]]
  $region30: #{tpu_custom_call.1} parent=0
    _
  %s6 = ssub.s32 1, %s4
  %s7 = scalar_select 0, %s6, %s4
  $region1: #{tpu_custom_call.1} parent=0
    #allocation2 [shape = 'u8[8192]{0}', space=vmem, size = 0x2000, scoped, tag = 'input window, operand 0, single buffered']
    #allocation3 [shape = 's32[1]{0}', space=sflag, size = 0x4, scoped, tag = 'scoped memory for tpu_custom_call.1']
    #allocation4 [shape = 's32[1]{0}', space=sflag, size = 0x4, scoped, tag = 'scoped memory for tpu_custom_call.1']
    #allocation5 [shape = 'u8[8192]{0}', space=vmem, size = 0x2000, scoped, tag = 'input window, operand 1, single buffered']
    #allocation6 [shape = 's32[1]{0}', space=sflag, size = 0x4, scoped, tag = 'scoped memory for tpu_custom_call.1']
    #allocation7 [shape = 'u8[8192]{0}', space=vmem, size = 0x2000, scoped, tag = 'output window, operand 0, single buffered']
    %8 = vsyncpa [#allocation3], 0
    %9 = vsyncpa [#allocation6], 0
    %10 = vsyncpa [#allocation4], 0
    // Predicated region
    $region2: #{tpu_custom_call.1} parent=1 // pred_check
      _
    $region3: #{tpu_custom_call.1} parent=1 // pred_check_branch
      %12 = sbr.rel (0) target = $region5
    $region4: #{tpu_custom_call.1} parent=1 // pred_region
      %s14 = ssub.s32 256, 256
      %15 = vsyncadd [#allocation3], %s14
      %s16 = sshll.u32 [#allocation2], 4
      %s17 = int_to_ptr.vmem [resolvable:$true] %s16
      %22 = dma.hbm_to_vmem [thread:$0]  %s0, 256, %s17, [#allocation3], 128, 128, 8
    $region5: #{tpu_custom_call.1} parent=1 // pred_fallthru
      _
    // Predicated region
    $region6: #{tpu_custom_call.1} parent=1 // pred_check
      _
    $region7: #{tpu_custom_call.1} parent=1 // pred_check_branch
      %24 = sbr.rel (0) target = $region9
    $region8: #{tpu_custom_call.1} parent=1 // pred_region
      %s26 = ssub.s32 256, 256
      %27 = vsyncadd [#allocation6], %s26
      %s28 = sshll.u32 [#allocation5], 4
      %s29 = int_to_ptr.vmem [resolvable:$true] %s28
      %34 = dma.hbm_to_vmem [thread:$0]  %s1, 256, %s29, [#allocation6], 64, 64, 4
    $region9: #{tpu_custom_call.1} parent=1 // pred_fallthru
      _
    // Predicated region
    $region10: #{tpu_custom_call.1} parent=1 // pred_check
      _
    $region11: #{tpu_custom_call.1} parent=1 // pred_check_branch
      %36 = sbr.rel (0) target = $region13
    $region12: #{tpu_custom_call.1} parent=1 // pred_region
      _
    $region13: #{tpu_custom_call.1} parent=1 // pred_fallthru
      _
    // Predicated region
    $region14: #{tpu_custom_call.1} parent=1 // pred_check
      _
    $region15: #{tpu_custom_call.1} parent=1 // pred_check_branch
      %38 = sbr.rel (0) target = $region17
    $region16: #{tpu_custom_call.1} parent=1 // pred_region
      %39 = dma.done [#allocation3], 256
    $region17: #{tpu_custom_call.1} parent=1 // pred_fallthru
      _
    // Predicated region
    $region18: #{tpu_custom_call.1} parent=1 // pred_check
      _
    $region19: #{tpu_custom_call.1} parent=1 // pred_check_branch
      %41 = sbr.rel (0) target = $region21
    $region20: #{tpu_custom_call.1} parent=1 // pred_region
      %42 = dma.done [#allocation6], 256
    $region21: #{tpu_custom_call.1} parent=1 // pred_fallthru
      _
    %v44 = vld [vmem:[#allocation2] sm:$0xff]
    %v45 = vld [vmem:[#allocation2 + $0x8] sm:$0xff]
    %v46 = vpack.c.bf16 %v45, %v44
    %v47 = vld [vmem:[#allocation5] sm:$0xf]
    %v48 = vld [vmem:[#allocation5 + $0x4] sm:$0xf]
    %v49 = vld [vmem:[#allocation5 + $0x8] sm:$0xf]
    %v50 = vld [vmem:[#allocation5 + $0xc] sm:$0xf]
    %v51 = vld [vmem:[%s2] sm:$0x1]
    %v53 = vlaneseq
    %v54 = vshrl.u32 %v53, 7
    %v55 = vsub.s32 0, %v54
    %v56 = vrot.slane %v51, %v55
    %v62 = vunpack.c.l.b16 %v47
    %v63 = vunpack.c.l.b16 %v48
    %v64 = vunpack.c.l.b16 %v49
    %v65 = vunpack.c.l.b16 %v50
    %v66 = vpack.c.b16 %v63, %v62
    %v67 = vpack.c.b16 %v65, %v64
    %vm70 = vcmask 261120
    %v72 = vsel %vm70, %v46, 0
    %74 = vmatprep.subr.bf16.mxu0 0
    %75 = vmatpush1.bf16.msra.mxu0 %v66
    %76 = vmatprep.subr.bf16.mxu0 0
    %77 = vmatpush1.bf16.msra.mxu0 %v67
    %78 = vmatprep.subr.bf16.mxu0 0
    %79 = vmatpush1.bf16.msra.mxu0 0
    %80 = vmatprep.subr.bf16.mxu0 0
    %81 = vmatpush1.bf16.msra.mxu0 0
    %82 = vmatprep.subr.bf16.mxu0 0
    %83 = vmatpush1.bf16.msra.mxu0 0
    %84 = vmatprep.subr.bf16.mxu0 0
    %85 = vmatpush1.bf16.msra.mxu0 0
    %86 = vmatprep.subr.bf16.mxu0 0
    %87 = vmatpush1.bf16.msra.mxu0 0
    %88 = vmatprep.subr.bf16.mxu0 0
    %89 = vmatpush1.bf16.msra.mxu0 0
    %90 = vmatprep.subr.bf16.mxu0 0
    %91 = vmatpush1.bf16.msra.mxu0 0
    %92 = vmatprep.subr.bf16.mxu0 0
    %93 = vmatpush1.bf16.msra.mxu0 0
    %94 = vmatprep.subr.bf16.mxu0 0
    %95 = vmatpush1.bf16.msra.mxu0 0
    %96 = vmatprep.subr.bf16.mxu0 0
    %97 = vmatpush1.bf16.msra.mxu0 0
    %98 = vmatprep.subr.bf16.mxu0 0
    %99 = vmatpush1.bf16.msra.mxu0 0
    %100 = vmatprep.subr.bf16.mxu0 0
    %101 = vmatpush1.bf16.msra.mxu0 0
    %102 = vmatprep.subr.bf16.mxu0 0
    %103 = vmatpush1.bf16.msra.mxu0 0
    %104 = vmatprep.subr.bf16.mxu0 0
    %105 = vmatpush1.bf16.msra.mxu0 0
    %106 = vmatprep.mubr.bf16.mxu0 0
    %107 = vmatmul.mubr.bf16.gmra.mrb[0].mxu0 %v72
    %v108 = vpop.f32.mrb[0].mxu0
    %v109 = vadd.f32 %v56, %v108
    %v110 = vpop.f32.mrb[0].mxu0
    %v111 = vpop.f32.mrb[0].mxu0
    %v112 = vadd.f32 %v56, %v111
    %v113 = vpop.f32.mrb[0].mxu0
    %114 = vdwg.mxu0
    %v115 = vmax.f32 %v109, 0.0
    %v116 = vmax.f32 %v112, 0.0
    %117 = vst [vmem:[#allocation7] sm:$0xff] %v115
    %118 = vst [vmem:[#allocation7 + $0x8] sm:$0xff] %v116
    // Predicated region
    $region22: #{tpu_custom_call.1} parent=1 // pred_check
      _
    $region23: #{tpu_custom_call.1} parent=1 // pred_check_branch
      %120 = sbr.rel (0) target = $region25
    $region24: #{tpu_custom_call.1} parent=1 // pred_region
      %s122 = ssub.s32 256, 256
      %123 = vsyncadd [#allocation4], %s122
      %s124 = sshll.u32 [#allocation7], 4
      %s125 = int_to_ptr.vmem [resolvable:$true] %s124
      %130 = dma.vmem_to_hbm [thread:$0]  %s125, 256, %s3, [#allocation4], 128, 128, 8
    $region25: #{tpu_custom_call.1} parent=1 // pred_fallthru
      _
    // Predicated region
    $region26: #{tpu_custom_call.1} parent=1 // pred_check
      _
    $region27: #{tpu_custom_call.1} parent=1 // pred_check_branch
      %132 = sbr.rel (0) target = $region29
    $region28: #{tpu_custom_call.1} parent=1 // pred_region
      %133 = dma.done [#allocation4], 256
    $region29: #{tpu_custom_call.1} parent=1 // pred_fallthru
      _
    %134 = vsyncpa [#allocation3], 1
    %135 = vsyncpa [#allocation6], 1
    %136 = vsyncpa [#allocation4], 1

</llo_original>
